<compile_context>
chip_gen: v5e
topology: v5e:2x2
jax: 0.10.0
libtpu: 0.0.40
codegen_flags: <defaults>
</compile_context>

<pallas_src>
import functools

import jax
import jax.numpy as jnp
from jax import lax
from jax.experimental import pallas as pl
from jax.experimental.pallas import tpu as pltpu

_NEG_BIG = -1e30                      # finite "-inf" (avoids -inf - -inf = nan)
_VMEM_LIMIT = 48 * 1024 * 1024        # scoped VMEM budget with headroom on v7x


def _round_up(x, m):
    return ((x + m - 1) // m) * m


# ----------------------------------------------------------------------------
# Kernel 1: per-head projection  xp[h] = x @ W[h]   (bf16 MXU, f32 accumulate)
# ----------------------------------------------------------------------------
def _project_kernel(x_ref, w_ref, xp_ref):
    xp_ref[...] = jnp.dot(
        x_ref[...], w_ref[...], preferred_element_type=jnp.float32
    ).astype(xp_ref.dtype)


# ----------------------------------------------------------------------------
# Kernel 2: tiled attention with online softmax.
#   grid = (dst_tiles, H, src_tiles); scratch (m, l, acc) is the running
#   softmax state for the current (dst tile, head).
# ----------------------------------------------------------------------------
def _attn_kernel(xp_dst_ref, xp_src_ref, asrc_ref, adst_ref, adj_ref, out_ref,
                 m_scr, l_scr, acc_scr, *, heads, channels, concat):
    h = pl.program_id(1)
    k = pl.program_id(2)
    num_k = pl.num_programs(2)

    @pl.when(k == 0)
    def _():
        m_scr[...] = jnp.full_like(m_scr, _NEG_BIG)
        l_scr[...] = jnp.zeros_like(l_scr)
        acc_scr[...] = jnp.zeros_like(acc_scr)

    xp_dst = xp_dst_ref[...]                         # (TM, C) bf16
    xp_src = xp_src_ref[...]                         # (TK, C) bf16

    # Attention logit halves on the MXU (no XLU transpose needed):
    #   a_dst[i] = <xp_dst[i], att_dst>  -> (TM, 1)
    #   a_src[j] = <xp_src[j], att_src>  -> (1, TK)  directly in row layout.
    a_dst = lax.dot_general(xp_dst, adst_ref[...], (((1,), (1,)), ((), ())),
                            preferred_element_type=jnp.float32)
    a_src = lax.dot_general(asrc_ref[...], xp_src, (((1,), (1,)), ((), ())),
                            preferred_element_type=jnp.float32)

    e = a_dst + a_src                                # (TM, TK) f32
    e = jnp.where(e > 0, e, 0.2 * e)                 # LeakyReLU(0.2)
    adjf = adj_ref[...].astype(jnp.float32)          # int8 mask tile -> f32
    e = jnp.where(adjf > 0.0, e, _NEG_BIG)

    # Online softmax update (all f32).  Masked entries: exp(-1e30 - m) == 0 once
    # any real edge has been seen in this row; earlier spurious mass is wiped by
    # corr == exp(-1e30 - finite) == 0.  Self-loops guarantee every row sees a
    # real edge, so no second mask select is needed.
    m_prev = m_scr[...]
    m_new = jnp.maximum(m_prev, jnp.max(e, axis=-1, keepdims=True))
    corr = jnp.exp(m_prev - m_new)
    p = jnp.exp(e - m_new)
    l_scr[...] = corr * l_scr[...] + jnp.sum(p, axis=-1, keepdims=True)
    acc_scr[...] = corr * acc_scr[...] + jnp.dot(
        p.astype(jnp.bfloat16), xp_src, preferred_element_type=jnp.float32)
    m_scr[...] = m_new

    @pl.when(k == num_k - 1)
    def _():
        res = acc_scr[...] * pl.reciprocal(l_scr[...], approx=True)   # (TM, C)
        if concat:
            # Scatter this head's C channels into the lane-dense (TM, H*C)
            # output slab (resident across the h axis) via a static lane mask.
            lane = lax.broadcasted_iota(
                jnp.int32, (res.shape[0], heads * channels), 1)
            res_w = jnp.where((lane // channels) == h,
                              jnp.tile(res, (1, heads)), 0.0)
        else:
            res_w = res * (1.0 / heads)              # in-kernel head mean

        @pl.when(h == 0)
        def _():
            out_ref[...] = res_w

        @pl.when(h > 0)
        def _():
            out_ref[...] += res_w


# ----------------------------------------------------------------------------
# One GATConv layer (operates at padded node count n_pad).
# ----------------------------------------------------------------------------
def gat_conv(x_f32, adj_i8, w, att_src, att_dst, bias, concat, tm, tk):
    """x_f32: (N_pad, F_in) f32; adj_i8: (N_pad, N_pad) int8 adj[dst, src];
    w: (H, F_in, C); att_*: (H, 1, C); bias: (H*C,) or (C,)."""
    H, F_in, C = w.shape
    n_pad = x_f32.shape[0]

    x_bf = x_f32.astype(jnp.bfloat16)
    w_bf = w.astype(jnp.bfloat16)
    asrc_bf = att_src.astype(jnp.bfloat16)
    adst_bf = att_dst.astype(jnp.bfloat16)

    # ---- projection ---------------------------------------------------------
    tmp = min(n_pad, 512)
    num_p = n_pad // tmp
    xp = pl.pallas_call(
        _project_kernel,
        out_shape=jax.ShapeDtypeStruct((H, n_pad, C), jnp.bfloat16),
        grid=(H, num_p),
        in_specs=[
            pl.BlockSpec((tmp, F_in), lambda h, i: (i, 0)),
            pl.BlockSpec((None, F_in, C), lambda h, i: (h, 0, 0)),
        ],
        out_specs=pl.BlockSpec((None, tmp, C), lambda h, i: (h, i, 0)),
        compiler_params=pltpu.CompilerParams(
            dimension_semantics=("parallel", "parallel"),
            vmem_limit_bytes=_VMEM_LIMIT),
    )(x_bf, w_bf)

    # ---- tiled attention with online softmax --------------------------------
    num_i = n_pad // tm
    num_k = n_pad // tk
    out_cols = H * C if concat else C

    kern = functools.partial(_attn_kernel, heads=H, channels=C, concat=concat)
    out = pl.pallas_call(
        kern,
        out_shape=jax.ShapeDtypeStruct((n_pad, out_cols), jnp.float32),
        grid=(num_i, H, num_k),
        in_specs=[
            pl.BlockSpec((None, tm, C), lambda i, h, k: (h, i, 0)),   # xp (dst)
            pl.BlockSpec((None, tk, C), lambda i, h, k: (h, k, 0)),   # xp (src)
            pl.BlockSpec((None, 1, C), lambda i, h, k: (h, 0, 0)),    # att_src
            pl.BlockSpec((None, 1, C), lambda i, h, k: (h, 0, 0)),    # att_dst
            pl.BlockSpec((tm, tk), lambda i, h, k: (i, k)),           # adj int8
        ],
        out_specs=pl.BlockSpec((tm, out_cols), lambda i, h, k: (i, 0)),
        scratch_shapes=[
            pltpu.VMEM((tm, 1), jnp.float32),   # running max m
            pltpu.VMEM((tm, 1), jnp.float32),   # running denom l
            pltpu.VMEM((tm, C), jnp.float32),   # running weighted sum acc
        ],
        compiler_params=pltpu.CompilerParams(
            dimension_semantics=("parallel", "arbitrary", "arbitrary"),
            vmem_limit_bytes=_VMEM_LIMIT),
    )(xp, xp, asrc_bf, adst_bf, adj_i8)

    return out + bias


# ----------------------------------------------------------------------------
# Parameter init mirroring the module's __init__ shapes.
# ----------------------------------------------------------------------------
def init_gat_params(key, in_channels, hidden_channels, out_channels,
                    num_layers=2, num_heads=8, concat=True):
    layer_specs = [(in_channels, hidden_channels, num_heads, concat)]
    for _ in range(num_layers - 2):
        in_dim = hidden_channels * num_heads if concat else hidden_channels
        layer_specs.append((in_dim, hidden_channels, num_heads, concat))
    if num_layers > 1:
        in_dim = hidden_channels * num_heads if concat else hidden_channels
        layer_specs.append((in_dim, out_channels, 1, False))

    params = []
    for (fi, fo, h, cc) in layer_specs:
        key, k1, k2, k3 = jax.random.split(key, 4)
        w = jax.random.normal(k1, (h, fi, fo), jnp.float32) * (1.0 / jnp.sqrt(fi))
        a_src = jax.random.normal(k2, (h, 1, fo), jnp.float32) * 0.1
        a_dst = jax.random.normal(k3, (h, 1, fo), jnp.float32) * 0.1
        bias = jnp.zeros((h * fo,) if cc else (fo,), jnp.float32)
        params.append((w, a_src, a_dst, bias, cc))
    return params


# ----------------------------------------------------------------------------
# Full forward pass.
# ----------------------------------------------------------------------------
def gat_forward(x, adj, params):
    """x: (N, F_in) f32; adj: (N, N) {0,1} mask adj[dst, src] (self-loops added
    here, matching GATConv add_self_loops=True)."""
    n = x.shape[0]

    # Choose tiles / padded node count once for the whole layer stack.
    if n <= 512:
        n_pad = _round_up(n, 32)       # 32: int8 sublane packing of adj tiles
        tm = tk = n_pad                # single tile — blocks equal full dims
    else:
        tm, tk = 256, 512              # fits v7x 64 MiB VMEM; v6e can go larger
        n_pad = _round_up(n, 512)

    adj = jnp.maximum(adj.astype(jnp.float32), jnp.eye(n, dtype=jnp.float32))
    adj_p = jnp.zeros((n_pad, n_pad), jnp.float32).at[:n, :n].set(adj)
    # self-loops on padded rows keep their (discarded) softmax well defined
    adj_p = adj_p.at[jnp.arange(n, n_pad), jnp.arange(n, n_pad)].set(1.0)
    adj_i8 = adj_p.astype(jnp.int8)

    x_p = jnp.zeros((n_pad, x.shape[1]), jnp.float32).at[:n, :].set(x)

    h = x_p
    for i, (w, a_src, a_dst, b, cc) in enumerate(params):
        h = gat_conv(h, adj_i8, w, a_src, a_dst, b, cc, tm, tk)
        if i < len(params) - 1:
            h = jax.nn.relu(h)
            # dropout=0.0 in this configuration -> no-op.
            # TODO(synk): attention-coefficient dropout (p>0, training) not implemented.
    return h[:n]


if __name__ == "__main__":
    key = jax.random.PRNGKey(0)
    N, F_IN, HIDDEN, OUT, HEADS = 16, 8, 8, 4, 4

    key, kx, ke1, ke2 = jax.random.split(key, 4)
    x = jax.random.normal(kx, (N, F_IN), jnp.float32)

    # Deterministic small directed graph: a ring plus 16 random edges.
    ring_src = jnp.arange(N)
    ring_dst = (ring_src + 1) % N
    extra_src = jax.random.randint(ke1, (16,), 0, N)
    extra_dst = (extra_src + jax.random.randint(ke2, (16,), 1, N)) % N
    edge_index = jnp.stack([jnp.concatenate([ring_src, extra_src]),
                            jnp.concatenate([ring_dst, extra_dst])])  # [2, E]

    # Dense adjacency mask adj[dst, src] (self-loops are added in gat_forward).
    # NOTE: duplicate edges collapse into one mask entry (differs from PyG on multigraphs).
    adj = jnp.zeros((N, N), jnp.float32).at[edge_index[1], edge_index[0]].set(1.0)

    params = init_gat_params(key, F_IN, HIDDEN, OUT,
                             num_layers=2, num_heads=HEADS, concat=True)

    y = gat_forward(x, adj, params)
    jax.block_until_ready(y)
    assert y.shape == (N, OUT) and y.dtype == jnp.float32
    assert bool(jnp.all(jnp.isfinite(y)))
    print("KERNEL_OK")
</pallas_src>

<mosaic_0001>
module attributes {stable_mosaic.version = 11 : i64} {
  func.func @_project_kernel(%arg0: i32, %arg1: i32, %arg2: memref<32x8xbf16, #tpu.memory_space<vmem>>, %arg3: memref<1x8x8xbf16, #tpu.memory_space<vmem>>, %arg4: memref<1x32x8xbf16, #tpu.memory_space<vmem>>) attributes {dimension_semantics = [#tpu.dimension_semantics<parallel>, #tpu.dimension_semantics<parallel>], iteration_bounds = array<i64: 4, 1>, scalar_prefetch = 0 : i64, scratch_operands = 0 : i64, tpu.core_type = #tpu.core_type<tc>, window_params = [{transform_indices = @transform_0, window_bounds = array<i64: 32, 8>}, {transform_indices = @transform_1, window_bounds = array<i64: 1, 8, 8>}, {transform_indices = @transform_2, window_bounds = array<i64: 1, 32, 8>}]} {
    %c0 = arith.constant 0 : index
    %c0_0 = arith.constant 0 : index
    %0 = vector.load %arg2[%c0, %c0_0] : memref<32x8xbf16, #tpu.memory_space<vmem>>, vector<32x8xbf16>
    %c0_1 = arith.constant 0 : index
    %c0_2 = arith.constant 0 : index
    %c0_3 = arith.constant 0 : index
    %1 = vector.load %arg3[%c0_1, %c0_2, %c0_3] : memref<1x8x8xbf16, #tpu.memory_space<vmem>>, vector<1x8x8xbf16>
    %2 = vector.shape_cast %1 : vector<1x8x8xbf16> to vector<8x8xbf16>
    %cst = arith.constant dense<0.000000e+00> : vector<32x8xf32>
    %3 = tpu.matmul %0, %2, %cst {dimension_numbers = #tpu.dot_dimension_numbers<[1], [0], [0], [1], [0, 0, 1, 1], [], []>} : vector<32x8xbf16>, vector<8x8xbf16>, vector<32x8xf32> -> vector<32x8xf32>
    %4 = arith.truncf %3 : vector<32x8xf32> to vector<32x8xbf16>
    %c0_4 = arith.constant 0 : index
    %c0_5 = arith.constant 0 : index
    %c0_6 = arith.constant 0 : index
    %5 = vector.load %arg4[%c0_4, %c0_5, %c0_6] : memref<1x32x8xbf16, #tpu.memory_space<vmem>>, vector<1x32x8xbf16>
    %6 = vector.shape_cast %5 : vector<1x32x8xbf16> to vector<32x8xbf16>
    %7 = vector.shape_cast %4 : vector<32x8xbf16> to vector<1x32x8xbf16>
    tpu.vector_store %arg4[%c0_4, %c0_5, %c0_6], %7 {strides = array<i32>} : memref<1x32x8xbf16, #tpu.memory_space<vmem>>, vector<1x32x8xbf16>,
    return
  }
  func.func @transform_0(%arg0: i32, %arg1: i32) -> (i32, i32) {
    %c0_i32 = arith.constant 0 : i32
    %c0_i32_0 = arith.constant 0 : i32
    return %arg1, %c0_i32 : i32, i32
  }
  func.func @transform_1(%arg0: i32, %arg1: i32) -> (i32, i32, i32) {
    %c0_i32 = arith.constant 0 : i32
    %c0_i32_0 = arith.constant 0 : i32
    %c0_i32_1 = arith.constant 0 : i32
    return %arg0, %c0_i32, %c0_i32_0 : i32, i32, i32
  }
  func.func @transform_2(%arg0: i32, %arg1: i32) -> (i32, i32, i32) {
    %c0_i32 = arith.constant 0 : i32
    %c0_i32_0 = arith.constant 0 : i32
    return %arg0, %arg1, %c0_i32 : i32, i32, i32
  }
}

</mosaic_0001>

<llo_original>
// kernel: tpu_custom_call.1
$region0: #{tpu_custom_call.1}
  #allocation0 [shape = 'u32[]', space=smem, size = 0x4, offset = 0x4, fixed_abs, tag = 'smem constant byte address 0x4 - core index']
  #allocation1 [shape = 'u32[72,128]{1,0:T(1,128)}', space=vmem, size = 0x9000, scoped, tag = 'internal scratch']
  %s0 = inlined_call_operand.vmem [shape: bf16[32,8], index: 0, kind: input, shape index: {}]
  %s1 = inlined_call_operand.vmem [shape: bf16[4,8,8], index: 1, kind: input, shape index: {}]
  %s2 = inlined_call_operand.vmem [shape: bf16[4,32,8], index: 2, kind: output, shape index: {}]
  %s3 = sld [smem:[#allocation0]]
  $region41: #{tpu_custom_call.1} parent=0
    _
  %s5 = ssub.s32 1, %s3
  %s6 = scalar_select 0, %s5, %s3
  loop: start=0, step=1, limit=6
  $region2: #{tpu_custom_call.1} parent=0 // loop_pre_header
    _
  $region3: #{tpu_custom_call.1} parent=0 // loop_header
    %s8 = sphi 0, %s12
    %p9 = scmp.ge.s32.totalorder %s8, 6
    %s15 = sphi 0, %s27
    %s16 = sphi 0, %s23
    %s17 = sphi 0, %s15
    %s18 = sphi 0, %s16
    %s19 = sphi 0, %s17
    %s20 = sphi 0, %s18
    %s30 = sphi 0, %s32
    %s33 = sphi 0, %s30
    %s34 = sphi 0, %s33
    %s50 = sphi 0, %s34
    %s56 = sphi 0, %s58
    %s59 = sphi 0, %s56
    %s60 = sphi 0, %s59
    %s76 = sphi 0, %s60
    %s84 = sphi 0, %s86
    %s87 = sphi 0, %s84
    %s88 = sphi 0, %s87
    %s104 = sphi 0, %s88
  $region4: #{tpu_custom_call.1} parent=0 // loop_header_branch
    %11 = sbr.rel (%p9) target = $region8
  $region5: #{tpu_custom_call.1} parent=0 // loop_body
    %s13 = ssub.s32 %s8, 1
    %s14 = ssub.s32 %s8, 2
    %s21 = sadd.s32 1, %s16
    %p22 = scmp.ge.s32.totalorder %s21, 1
    %s23 = scalar_select %p22, 0, %s21
    %s24 = sadd.s32 1, %s15
    %s25 = scalar_select %p22, %s24, %s15
    %p26 = scmp.ge.s32.totalorder %s25, 4
    %s27 = scalar_select %p26, 0, %s25
    %s28 = ssub.s32 %s16, %s23
    %p29 = scmp.eq.s32.totalorder %s28, 0
    %s31 = sadd.s32 %s30, 1
    %s32 = scalar_select %p29, %s30, %s31
    %p35 = pneg %p29
    %p36 = scmp.eq.s32.totalorder %s8, 3
    %p37 = por %p35, %p36
    %p38 = scmp.ne.s32.totalorder %s30, %s33
    %p39 = scmp.eq.s32.totalorder %s8, 0
    %p40 = por %p38, %p39
    %p41 = scmp.ne.s32.totalorder %s30, %s33
    %p42 = scmp.eq.s32.totalorder %s13, 3
    %p43 = por %p41, %p42
    %p44 = scmp.ne.s32.totalorder %s33, %s34
    %p45 = scmp.eq.s32.totalorder %s13, 0
    %p46 = por %p44, %p45
    %p47 = scmp.ne.s32.totalorder %s33, %s34
    %p48 = scmp.eq.s32.totalorder %s14, 3
    %p49 = por %p47, %p48
    %p51 = scmp.ne.s32.totalorder %s34, %s50
    %p52 = scmp.eq.s32.totalorder %s14, 0
    %p53 = por %p51, %p52
    %s54 = ssub.s32 %s15, %s27
    %p55 = scmp.eq.s32.totalorder %s54, 0
    %s57 = sadd.s32 %s56, 1
    %s58 = scalar_select %p55, %s56, %s57
    %p61 = pneg %p55
    %p62 = scmp.eq.s32.totalorder %s8, 3
    %p63 = por %p61, %p62
    %p64 = scmp.ne.s32.totalorder %s56, %s59
    %p65 = scmp.eq.s32.totalorder %s8, 0
    %p66 = por %p64, %p65
    %p67 = scmp.ne.s32.totalorder %s56, %s59
    %p68 = scmp.eq.s32.totalorder %s13, 3
    %p69 = por %p67, %p68
    %p70 = scmp.ne.s32.totalorder %s59, %s60
    %p71 = scmp.eq.s32.totalorder %s13, 0
    %p72 = por %p70, %p71
    %p73 = scmp.ne.s32.totalorder %s59, %s60
    %p74 = scmp.eq.s32.totalorder %s14, 3
    %p75 = por %p73, %p74
    %p77 = scmp.ne.s32.totalorder %s60, %s76
    %p78 = scmp.eq.s32.totalorder %s14, 0
    %p79 = por %p77, %p78
    %s80 = ssub.s32 %s15, %s27
    %s81 = ssub.s32 %s16, %s23
    %s82 = sor.u32 %s80, %s81
    %p83 = scmp.eq.s32.totalorder %s82, 0
    %s85 = sadd.s32 %s84, 1
    %s86 = scalar_select %p83, %s84, %s85
    %p89 = pneg %p83
    %p90 = scmp.eq.s32.totalorder %s8, 3
    %p91 = por %p89, %p90
    %p92 = scmp.ne.s32.totalorder %s84, %s87
    %p93 = scmp.eq.s32.totalorder %s8, 0
    %p94 = por %p92, %p93
    %p95 = scmp.ne.s32.totalorder %s84, %s87
    %p96 = scmp.eq.s32.totalorder %s13, 3
    %p97 = por %p95, %p96
    %p98 = scmp.ne.s32.totalorder %s87, %s88
    %p99 = scmp.eq.s32.totalorder %s13, 0
    %p100 = por %p98, %p99
    %p101 = scmp.ne.s32.totalorder %s87, %s88
    %p102 = scmp.eq.s32.totalorder %s14, 3
    %p103 = por %p101, %p102
    %p105 = scmp.ne.s32.totalorder %s88, %s104
    %p106 = scmp.eq.s32.totalorder %s14, 0
    %p107 = por %p105, %p106
    %p108 = scmp.le.s32.totalorder 1, %s8
    %p109 = scmp.lt.s32.totalorder %s8, 5
    %p110 = pnand %p108, %p109
    %p111 = pneg %p110
    // Predicated region
    $region9: #{tpu_custom_call.1} parent=5 // pred_check
      _
    $region10: #{tpu_custom_call.1} parent=5 // pred_check_branch
      %113 = sbr.rel (%p110) target = $region12
    $region11: #{tpu_custom_call.1} parent=5 // pred_region
      %s114 = ssub.s32 %s8, 1
      // Predicated region
      $region13: #{tpu_custom_call.1} parent=11 // pred_check
        %p115 = pneg %p46
      $region14: #{tpu_custom_call.1} parent=11 // pred_check_branch
        %117 = sbr.rel (%p115) target = $region16
      $region15: #{tpu_custom_call.1} parent=11 // pred_region
        %s118 = smul.u32 4, %s18
        %p119 = scmp.lt.s32.totalorder %s118, 3
        %s120 = scalar_select %p119, %s118, 3
        %s121 = smul.addr %s120, 4
        %s122 = scalar_lea.vmem %s0, %s121
        %s123 = smul.u32 4, %s18
      $region16: #{tpu_custom_call.1} parent=11 // pred_fallthru
        _
    $region12: #{tpu_custom_call.1} parent=5 // pred_fallthru
      _
    %p124 = scmp.lt.s32.totalorder %s8, 4
    // Predicated region
    $region17: #{tpu_custom_call.1} parent=5 // pred_check
      %p125 = pneg %p124
    $region18: #{tpu_custom_call.1} parent=5 // pred_check_branch
      %127 = sbr.rel (%p125) target = $region20
    $region19: #{tpu_custom_call.1} parent=5 // pred_region
      // Predicated region
      $region21: #{tpu_custom_call.1} parent=19 // pred_check
        %p128 = pneg %p66
      $region22: #{tpu_custom_call.1} parent=19 // pred_check_branch
        %130 = sbr.rel (%p128) target = $region24
      $region23: #{tpu_custom_call.1} parent=19 // pred_region
        %p131 = scmp.lt.s32.totalorder %s15, 3
        %s132 = scalar_select %p131, %s15, 3
        %s133 = smul.addr %s132, 4
        %s134 = scalar_lea.vmem %s1, %s133
      $region24: #{tpu_custom_call.1} parent=19 // pred_fallthru
        _
    $region20: #{tpu_custom_call.1} parent=5 // pred_fallthru
      _
    %p135 = scmp.le.s32.totalorder 1, %s8
    %p136 = scmp.lt.s32.totalorder %s8, 5
    %p137 = pnand %p135, %p136
    %p138 = pneg %p137
    // Predicated region
    $region25: #{tpu_custom_call.1} parent=5 // pred_check
      _
    $region26: #{tpu_custom_call.1} parent=5 // pred_check_branch
      %140 = sbr.rel (%p137) target = $region28
    $region27: #{tpu_custom_call.1} parent=5 // pred_region
      %s141 = ssub.s32 %s8, 1
      %s142 = smul.u32 4, %s18
      %p143 = scmp.lt.s32.totalorder %s142, 3
      %s144 = scalar_select %p143, %s142, 3
      %s145 = smul.addr %s144, 4
      %s146 = scalar_lea.vmem %s0, %s145
      %p147 = pneg %p46
      %p148 = pneg %p43
      %p149 = scmp.lt.s32.totalorder %s17, 3
      %s150 = scalar_select %p149, %s17, 3
      %s151 = smul.addr %s150, 4
      %s152 = scalar_lea.vmem %s1, %s151
      %p153 = pneg %p72
      %p154 = pneg %p69
      %p155 = pneg %p100
      %p156 = pneg %p97
      %s157 = smul.u32 4, %s18
      %p158 = scmp.lt.s32.totalorder %s17, 3
      %s159 = scalar_select %p158, %s17, 3
      %p160 = scmp.lt.s32.totalorder %s157, 3
      %s161 = scalar_select %p160, %s157, 3
      %s162 = smul.addr %s159, 4
      %s163 = sadd.s32 %s161, %s162
      %s164 = smul.addr %s163, 4
      %s165 = scalar_lea.vmem %s2, %s164
      %s166 = smul.u32 4, %s18
      %p167 = scmp.lt.s32.totalorder %s166, 3
      %s168 = scalar_select %p167, %s166, 3
      %s169 = smul.addr %s168, 4
      %s170 = scalar_lea.vmem %s0, %s169
      %s171 = smul.u32 4, %s18
      %p172 = scmp.lt.s32.totalorder %s17, 3
      %s173 = scalar_select %p172, %s17, 3
      %s174 = smul.addr %s173, 4
      %s175 = scalar_lea.vmem %s1, %s174
      %s176 = smul.u32 4, %s18
      %p177 = scmp.lt.s32.totalorder %s17, 3
      %s178 = scalar_select %p177, %s17, 3
      %p179 = scmp.lt.s32.totalorder %s176, 3
      %s180 = scalar_select %p179, %s176, 3
      %s181 = smul.addr %s178, 4
      %s182 = sadd.s32 %s180, %s181
      %s183 = smul.addr %s182, 4
      %s184 = scalar_lea.vmem %s2, %s183
      %s185 = smul.u32 4, %s18
      %v187 = vld [vmem:[%s170] sm:$0xf]
      %v188 = vld [vmem:[%s170 + $0x4] sm:$0xf]
      %v189 = vld [vmem:[%s170 + $0x8] sm:$0xf]
      %v190 = vld [vmem:[%s170 + $0xc] sm:$0xf]
      %v191 = vld [vmem:[%s175] sm:$0xf]
      %v196 = vunpack.c.l.b16 %v187
      %v197 = vunpack.c.l.b16 %v188
      %v198 = vunpack.c.l.b16 %v189
      %v199 = vunpack.c.l.b16 %v190
      %v200 = vpack.c.b16 %v197, %v196
      %v201 = vpack.c.b16 %v199, %v198
      %vm202 = vcmask 64512
      %v204 = vsel %vm202, %v200, 0
      %v207 = vsel %vm202, %v201, 0
      %vm209 = vcmask 1043456
      %v211 = vsel %vm209, %v191, 0
      %213 = vmatpush.bf16.msra.mxu0 0
      %214 = vmatpush.bf16.msra.mxu0 0
      %215 = vmatpush.bf16.msra.mxu0 0
      %216 = vmatpush.bf16.msra.mxu0 0
      %217 = vmatpush.bf16.msra.mxu0 0
      %218 = vmatpush.bf16.msra.mxu0 0
      %219 = vmatpush.bf16.msra.mxu0 0
      %220 = vmatpush.bf16.msra.mxu0 %v211
      %221 = vmatmul.bf16.gmra.mxu0 %v204
      %v222 = vpop.f32.mrf.mxu0
      %v223 = vadd.f32 0.0, %v222
      %v224 = vpop.f32.mrf.mxu0
      %v225 = vadd.f32 0.0, %v224
      %226 = vmatmul.bf16.gmra.mxu0 %v207
      %v227 = vpop.f32.mrf.mxu0
      %v228 = vadd.f32 0.0, %v227
      %v229 = vpop.f32.mrf.mxu0
      %v230 = vadd.f32 0.0, %v229
      %231 = vdwg.mxu0
      %v232 = vpack.c.bf16 %v223, %v223
      %v233 = vpack.c.bf16 %v225, %v225
      %v234 = vpack.c.bf16 %v228, %v228
      %v235 = vpack.c.bf16 %v230, %v230
      %vm236 = vcmask 60416
      %237 = vst.msk [vmem:[%s184] sm:$0xf] %vm236, %v232
      %238 = vst.msk [vmem:[%s184 + $0x4] sm:$0xf] %vm236, %v233
      %239 = vst.msk [vmem:[%s184 + $0x8] sm:$0xf] %vm236, %v234
      %240 = vst.msk [vmem:[%s184 + $0xc] sm:$0xf] %vm236, %v235
      %s241 = smul.u32 4, %s18
      %p242 = scmp.lt.s32.totalorder %s17, 3
      %s243 = scalar_select %p242, %s17, 3
      %p244 = scmp.lt.s32.totalorder %s241, 3
      %s245 = scalar_select %p244, %s241, 3
      %s246 = smul.addr %s243, 4
      %s247 = sadd.s32 %s245, %s246
      %s248 = smul.addr %s247, 4
      %s249 = scalar_lea.vmem %s2, %s248
      // Predicated region
      $region29: #{tpu_custom_call.1} parent=27 // pred_check
        %p250 = pneg %p97
      $region30: #{tpu_custom_call.1} parent=27 // pred_check_branch
        %252 = sbr.rel (%p250) target = $region32
      $region31: #{tpu_custom_call.1} parent=27 // pred_region
        %s253 = smul.u32 4, %s18
      $region32: #{tpu_custom_call.1} parent=27 // pred_fallthru
        _
    $region28: #{tpu_custom_call.1} parent=5 // pred_fallthru
      _
    %p254 = scmp.le.s32.totalorder 2, %s8
    // Predicated region
    $region33: #{tpu_custom_call.1} parent=5 // pred_check
      %p255 = pneg %p254
    $region34: #{tpu_custom_call.1} parent=5 // pred_check_branch
      %257 = sbr.rel (%p255) target = $region36
    $region35: #{tpu_custom_call.1} parent=5 // pred_region
      %s258 = ssub.s32 %s8, 2
      // Predicated region
      $region37: #{tpu_custom_call.1} parent=35 // pred_check
        %p259 = pneg %p103
      $region38: #{tpu_custom_call.1} parent=35 // pred_check_branch
        %261 = sbr.rel (%p259) target = $region40
      $region39: #{tpu_custom_call.1} parent=35 // pred_region
        %s262 = smul.u32 4, %s20
        %p263 = scmp.lt.s32.totalorder %s19, 3
        %s264 = scalar_select %p263, %s19, 3
        %p265 = scmp.lt.s32.totalorder %s262, 3
        %s266 = scalar_select %p265, %s262, 3
        %s267 = smul.addr %s264, 4
        %s268 = sadd.s32 %s266, %s267
        %s269 = smul.addr %s268, 4
        %s270 = scalar_lea.vmem %s2, %s269
      $region40: #{tpu_custom_call.1} parent=35 // pred_fallthru
        _
    $region36: #{tpu_custom_call.1} parent=5 // pred_fallthru
      _
  $region6: #{tpu_custom_call.1} parent=0 // loop_footer
    %s12 = sadd.s32 1, %s8
  $region7: #{tpu_custom_call.1} parent=0 // loop_footer_branch
    %7 = sbr.rel target = $region3
  $region8: #{tpu_custom_call.1} parent=0 // loop_exit
    _

</llo_original>
